<compile_context>
chip_gen: v7x
topology: tpu7x:2x2x1
jax: 0.10.0
libtpu: 0.0.40
codegen_flags: <defaults>
</compile_context>

<pallas_src>
import functools

import jax
import jax.numpy as jnp
from jax.experimental import pallas as pl
from jax.experimental.pallas import tpu as pltpu


def _cond_entropy_kernel(x_ref, o_ref, *, tb, batch, c_chunk):
    """Per batch-block partial of -sum_rows( sum_c p*logp ), lane-dense (1,128) out."""
    i = pl.program_id(0)
    C = x_ref.shape[1]
    starts = list(range(0, C, c_chunk))  # static class-chunk boundaries

    # Pass 1: per-row max over the class axis, streamed chunk-by-chunk so no
    # (tb, C) f32 temporary is materialized.
    m = jnp.full((tb, 1), -jnp.inf, dtype=jnp.float32)
    for c0 in starts:
        cw = min(c_chunk, C - c0)
        xc = x_ref[:, c0:c0 + cw].astype(jnp.float32)
        m = jnp.maximum(m, jnp.max(xc, axis=1, keepdims=True))

    # Pass 2: denom = sum_c exp(s), sum_es = sum_c s*exp(s), with s = x - m.
    # Chunk temporaries are consumed immediately; accumulators are (tb, 1).
    denom = jnp.zeros((tb, 1), dtype=jnp.float32)
    sum_es = jnp.zeros((tb, 1), dtype=jnp.float32)
    for c0 in starts:
        cw = min(c_chunk, C - c0)
        s = x_ref[:, c0:c0 + cw].astype(jnp.float32) - m
        e = jnp.exp(s)                                            # EUP
        denom = denom + jnp.sum(e, axis=1, keepdims=True)         # XLU
        sum_es = sum_es + jnp.sum(e * s, axis=1, keepdims=True)   # XLU

    # Closed form:  sum_c p*logp = sum_es/denom - log(denom)  (only (tb,1) cols).
    row_ent = sum_es * pl.reciprocal(denom, approx=False) - jnp.log(denom)

    # Mask rows of the (possibly padded) tail block.  jnp.where is a select and
    # does not propagate NaN/Inf from garbage padded rows -- keep it a select.
    row_ids = i * tb + jax.lax.broadcasted_iota(jnp.int32, (tb, 1), 0)
    row_ent = jnp.where(row_ids < batch, row_ent, 0.0)

    partial = -jnp.sum(row_ent, axis=0, keepdims=True)            # (1, 1)
    o_ref[...] = jnp.broadcast_to(partial, o_ref.shape).astype(o_ref.dtype)


def _round_up(a, m):
    return ((a + m - 1) // m) * m


def _vmem_capacity_bytes():
    try:
        return int(pltpu.get_tpu_info().vmem_capacity_bytes)
    except Exception:
        return 64 * 1024 * 1024  # conservative fallback (v7x per-TC VMEM)


def conditional_entropy_loss(x, *, tb=None, c_chunk=512):
    """x: (B, C) logits. Returns scalar -mean_b( sum_c softmax*log_softmax )."""
    B, C = x.shape
    itemsize = jnp.dtype(x.dtype).itemsize
    # Sublane alignment: 8 rows for f32, 16 for bf16, 32 for 8-bit dtypes.
    row_align = max(8, 32 // itemsize)

    # --- VMEM accounting -----------------------------------------------------
    # Per batch row: double-buffered input tile (2 * C * itemsize) plus ~4
    # chunk-sized f32 temporaries in the kernel body (x_f32, s, e, e*s on one
    # class chunk).  Budget = 3/4 of physical VMEM, capped at 96 MiB
    # (~48 MiB on v7x, 96 MiB on v5e/v6e), leaving headroom for Mosaic scratch.
    phys = _vmem_capacity_bytes()
    budget = min((phys * 3) // 4, 96 * 1024 * 1024)
    slack = 2 * 1024 * 1024
    cc = min(c_chunk, C)
    bytes_per_row = 2 * C * itemsize + 4 * cc * 4

    if tb is None:
        max_tb = (budget - slack) // bytes_per_row
        max_tb = max(row_align, (max_tb // row_align) * row_align)
        tb = min(1024, max_tb, _round_up(B, row_align))
        # Megacore (v7x): keep >= 2 grid blocks so the "parallel" batch axis
        # can be sharded across both TensorCores.
        if B > 2 * row_align:
            tb = min(tb, _round_up(pl.cdiv(B, 2), row_align))
    tb = max(row_align, _round_up(tb, row_align))

    num_blocks = pl.cdiv(B, tb)

    # Tie the scoped-VMEM limit to the actual working set (not a fixed 32 MiB).
    needed = tb * bytes_per_row + slack
    vmem_limit = int(max(32 * 1024 * 1024,
                         min(needed + 4 * 1024 * 1024, phys - 8 * 1024 * 1024)))

    kernel = functools.partial(_cond_entropy_kernel, tb=tb, batch=B, c_chunk=cc)

    partials = pl.pallas_call(
        kernel,
        out_shape=jax.ShapeDtypeStruct((num_blocks, 128), jnp.float32),
        grid_spec=pltpu.PrefetchScalarGridSpec(
            num_scalar_prefetch=0,
            grid=(num_blocks,),
            in_specs=[pl.BlockSpec((tb, C), lambda i: (i, 0))],
            out_specs=pl.BlockSpec((1, 128), lambda i: (i, 0)),
        ),
        compiler_params=pltpu.CompilerParams(
            dimension_semantics=("parallel",),
            vmem_limit_bytes=vmem_limit,
        ),
    )(x)

    # Per-block partial sums -> mean over the batch (dim=0).
    return jnp.sum(partials[:, 0]) / B


def _reference(x):
    p = jax.nn.softmax(x, axis=1)
    logp = jax.nn.log_softmax(x, axis=1)
    b = jnp.sum(p * logp, axis=1)
    return -jnp.mean(b, axis=0)


if __name__ == "__main__":
    # Small shape consistent with the module: (batch, num_classes) logits.
    B, C = 16, 8
    x = jax.random.normal(jax.random.PRNGKey(0), (B, C), dtype=jnp.float32)
    loss = jax.block_until_ready(conditional_entropy_loss(x))
    ref = _reference(x)
    assert jnp.allclose(loss, ref, rtol=1e-5, atol=1e-5), (loss, ref)

    # Multi-block grid (default tb derivation -> >=2 blocks) + ragged tail mask.
    B2, C2 = 200, 128
    x2 = jax.random.normal(jax.random.PRNGKey(1), (B2, C2), dtype=jnp.float32)
    loss2 = jax.block_until_ready(conditional_entropy_loss(x2))
    ref2 = _reference(x2)
    assert jnp.allclose(loss2, ref2, rtol=1e-5, atol=1e-5), (loss2, ref2)

    # Explicit small tile + in-kernel class chunking (c_chunk < C) exercised.
    B3, C3 = 96, 384
    x3 = jax.random.normal(jax.random.PRNGKey(2), (B3, C3), dtype=jnp.float32)
    loss3 = jax.block_until_ready(conditional_entropy_loss(x3, tb=32, c_chunk=128))
    ref3 = _reference(x3)
    assert jnp.allclose(loss3, ref3, rtol=1e-5, atol=1e-5), (loss3, ref3)

    print("KERNEL_OK")
</pallas_src>

<mosaic_0001>
module attributes {stable_mosaic.version = 11 : i64} {
  func.func @_cond_entropy_kernel(%arg0: i32, %arg1: memref<16x8xf32, #tpu.memory_space<vmem>>, %arg2: memref<1x128xf32, #tpu.memory_space<vmem>>) attributes {dimension_semantics = [#tpu.dimension_semantics<parallel>], iteration_bounds = array<i64: 1>, scalar_prefetch = 0 : i64, scratch_operands = 0 : i64, tpu.core_type = #tpu.core_type<tc>, window_params = [{transform_indices = @transform_0, window_bounds = array<i64: 16, 8>}, {transform_indices = @transform_1, window_bounds = array<i64: 1, 128>}]} {
    %cst = arith.constant 0xFF800000 : f32
    %0 = vector.broadcast %cst : f32 to vector<16x1xf32>
    %c0 = arith.constant 0 : index
    %c0_0 = arith.constant 0 : index
    %1 = vector.load %arg1[%c0, %c0_0] : memref<16x8xf32, #tpu.memory_space<vmem>>, vector<16x8xf32>
    %cst_1 = arith.constant dense<0xFF800000> : vector<16xf32>
    %2 = vector.multi_reduction <maximumf>, %1, %cst_1 [1] : vector<16x8xf32> to vector<16xf32>
    %3 = vector.shape_cast %2 : vector<16xf32> to vector<16x1xf32>
    %4 = arith.maximumf %0, %3 : vector<16x1xf32>
    %cst_2 = arith.constant 0.000000e+00 : f32
    %5 = vector.broadcast %cst_2 : f32 to vector<16x1xf32>
    %cst_3 = arith.constant 0.000000e+00 : f32
    %6 = vector.broadcast %cst_3 : f32 to vector<16x1xf32>
    %c0_4 = arith.constant 0 : index
    %c0_5 = arith.constant 0 : index
    %7 = vector.load %arg1[%c0_4, %c0_5] : memref<16x8xf32, #tpu.memory_space<vmem>>, vector<16x8xf32>
    %8 = vector.broadcast %4 : vector<16x1xf32> to vector<16x8xf32>
    %9 = arith.subf %7, %8 : vector<16x8xf32>
    %10 = math.exp %9 : vector<16x8xf32>
    %cst_6 = arith.constant dense<0.000000e+00> : vector<16xf32>
    %11 = vector.multi_reduction <add>, %10, %cst_6 [1] : vector<16x8xf32> to vector<16xf32>
    %12 = vector.shape_cast %11 : vector<16xf32> to vector<16x1xf32>
    %13 = arith.addf %5, %12 : vector<16x1xf32>
    %14 = arith.mulf %10, %9 : vector<16x8xf32>
    %cst_7 = arith.constant dense<0.000000e+00> : vector<16xf32>
    %15 = vector.multi_reduction <add>, %14, %cst_7 [1] : vector<16x8xf32> to vector<16xf32>
    %16 = vector.shape_cast %15 : vector<16xf32> to vector<16x1xf32>
    %17 = arith.addf %6, %16 : vector<16x1xf32>
    %18 = tpu.reciprocal %13 : vector<16x1xf32> -> vector<16x1xf32>
    %19 = arith.mulf %17, %18 : vector<16x1xf32>
    %20 = math.log %13 : vector<16x1xf32>
    %21 = arith.subf %19, %20 : vector<16x1xf32>
    %c16_i32 = arith.constant 16 : i32
    %22 = arith.muli %arg0, %c16_i32 : i32
    %23 = tpu.iota {dimensions = array<i32: 0>} : vector<16x1xi32>
    %24 = vector.broadcast %22 : i32 to vector<16x1xi32>
    %25 = arith.addi %24, %23 : vector<16x1xi32>
    %c16_i32_8 = arith.constant 16 : i32
    %26 = vector.broadcast %c16_i32_8 : i32 to vector<16x1xi32>
    %27 = arith.cmpi slt, %25, %26 : vector<16x1xi32>
    %cst_9 = arith.constant 0.000000e+00 : f32
    %28 = vector.broadcast %cst_9 : f32 to vector<16x1xf32>
    %29 = arith.select %27, %21, %28 : vector<16x1xi1>, vector<16x1xf32>
    %cst_10 = arith.constant dense<0.000000e+00> : vector<1xf32>
    %30 = vector.multi_reduction <add>, %29, %cst_10 [0] : vector<16x1xf32> to vector<1xf32>
    %31 = vector.shape_cast %30 : vector<1xf32> to vector<1x1xf32>
    %cst_11 = arith.constant 0.000000e+00 : f32
    %32 = vector.broadcast %cst_11 : f32 to vector<1x1xf32>
    %33 = arith.subf %32, %31 : vector<1x1xf32>
    %34 = vector.shape_cast %33 : vector<1x1xf32> to vector<1x1xf32>
    %35 = vector.broadcast %34 : vector<1x1xf32> to vector<1x128xf32>
    %c0_12 = arith.constant 0 : index
    %c0_13 = arith.constant 0 : index
    %36 = vector.load %arg2[%c0_12, %c0_13] : memref<1x128xf32, #tpu.memory_space<vmem>>, vector<1x128xf32>
    tpu.vector_store %arg2[%c0_12, %c0_13], %35 {strides = array<i32>} : memref<1x128xf32, #tpu.memory_space<vmem>>, vector<1x128xf32>,
    return
  }
  func.func @transform_0(%arg0: i32) -> (i32, i32) {
    %c0_i32 = arith.constant 0 : i32
    %c0_i32_0 = arith.constant 0 : i32
    return %arg0, %c0_i32 : i32, i32
  }
  func.func @transform_1(%arg0: i32) -> (i32, i32) {
    %c0_i32 = arith.constant 0 : i32
    %c0_i32_0 = arith.constant 0 : i32
    return %arg0, %c0_i32 : i32, i32
  }
}

</mosaic_0001>

<llo_original>
// kernel: tpu_custom_call.1
$region0: #{tpu_custom_call.1}
  #allocation0 [shape = 'u32[]', space=smem, size = 0x4, offset = 0x4, fixed_abs, tag = 'smem constant byte address 0x4 - core index']
  #allocation1 [shape = 'u32[144,128]{1,0:T(1,128)}', space=vmem, size = 0x12000, scoped, tag = 'internal scratch']
  %s0 = inlined_call_operand.vmem [shape: f32[16,8], index: 0, kind: input, shape index: {}]
  %s1 = inlined_call_operand.hbm [shape: f32[1,128], index: 1, kind: output, shape index: {}]
  %s2 = sld [smem:[#allocation0]]
  $region14: #{tpu_custom_call.1} parent=0
    _
  %s4 = ssub.s32 1, %s2
  %s5 = scalar_select 0, %s4, %s2
  $region1: #{tpu_custom_call.1} parent=0
    #allocation2 [shape = 'u8[512]{0}', space=vmem, size = 0x400, scoped, tag = 'output window, operand 0, single buffered']
    #allocation3 [shape = 's32[1]{0}', space=sflag, size = 0x4, scoped, tag = 'scoped memory for tpu_custom_call.1']
    %6 = vsyncpa [#allocation3], 0
    // Predicated region
    $region2: #{tpu_custom_call.1} parent=1 // pred_check
      _
    $region3: #{tpu_custom_call.1} parent=1 // pred_check_branch
      %8 = sbr.rel (0) target = $region5
    $region4: #{tpu_custom_call.1} parent=1 // pred_region
      _
    $region5: #{tpu_custom_call.1} parent=1 // pred_fallthru
      _
    %v9 = vld [vmem:[%s0] sm:$0xff]
    %v10 = vld [vmem:[%s0 + $0x8] sm:$0xff]
    %vm11 = vcmask 64512
    %v12 = vsel %vm11, %v9, -inf
    %13 = vmax.xlane.f32.xlu0 %v12
    %v14 = vpop.xlane.xlu0 %13
    %v15 = vsel %vm11, %v10, -inf
    %16 = vmax.xlane.f32.xlu0 %v15
    %v17 = vpop.xlane.xlu0 %16
    %v18 = vsub.f32 %v9, %v14
    %v19 = vsub.f32 %v10, %v17
    %v20 = vmul.f32 %v18, 1.442695
    %v21 = vpow.pop %v20
    %v22 = vmul.f32 %v19, 1.442695
    %v23 = vpow.pop %v22
    %v24 = vsel %vm11, %v21, 0.0
    %25 = vadd.xlane.f32.xlu0 %v24
    %v26 = vpop.xlane.xlu0 %25
    %v27 = vsel %vm11, %v23, 0.0
    %28 = vadd.xlane.f32.xlu0 %v27
    %v29 = vpop.xlane.xlu0 %28
    %v30 = vadd.f32 %v26, 0.0
    %v31 = vadd.f32 %v29, 0.0
    %v32 = vmul.f32 %v21, %v18
    %v33 = vmul.f32 %v23, %v19
    %v34 = vsel %vm11, %v32, 0.0
    %35 = vadd.xlane.f32.xlu0 %v34
    %v36 = vpop.xlane.xlu0 %35
    %v37 = vsel %vm11, %v33, 0.0
    %38 = vadd.xlane.f32.xlu0 %v37
    %v39 = vpop.xlane.xlu0 %38
    %v40 = vadd.f32 %v36, 0.0
    %v41 = vadd.f32 %v39, 0.0
    %v42 = vrcp.pop %v30
    %v43 = vrcp.pop %v31
    %v44 = vmul.f32 %v40, %v42
    %v45 = vmul.f32 %v41, %v43
    %v46 = vlog2.pop %v30
    %v47 = vmul.f32 %v46, 0.6931472
    %v48 = vlog2.pop %v31
    %v49 = vmul.f32 %v48, 0.6931472
    %v50 = vsub.f32 %v44, %v47
    %v51 = vsub.f32 %v45, %v49
    %s52 = smul.u32 0, 16
    %v53 = vlaneseq
    %v54 = vshrl.u32 %v53, 7
    %v55 = vadd.s32 %v54, 8
    %v56 = vstv %s52
    %v57 = vadd.s32 %v56, %v54
    %v58 = vadd.s32 %v56, %v55
    %vm59 = vcmp.lt.s32.totalorder %v57, 16
    %vm60 = vcmp.lt.s32.totalorder %v58, 16
    %v61 = vsel %vm59, %v50, 0.0
    %v62 = vsel %vm60, %v51, 0.0
    %v63 = vadd.f32 %v61, %v62
    %v64 = vrot.slane %v63, 4
    %v65 = vadd.f32 %v63, %v64
    %v66 = vrot.slane %v65, 2
    %v67 = vadd.f32 %v65, %v66
    %v68 = vrot.slane %v67, 1
    %v69 = vadd.f32 %v67, %v68
    %v70 = vsub.f32 0.0, %v69
    %71 = vst [vmem:[#allocation2] sm:$0x1] %v70
    // Predicated region
    $region6: #{tpu_custom_call.1} parent=1 // pred_check
      _
    $region7: #{tpu_custom_call.1} parent=1 // pred_check_branch
      %73 = sbr.rel (0) target = $region9
    $region8: #{tpu_custom_call.1} parent=1 // pred_region
      %s75 = ssub.s32 16, 16
      %76 = vsyncadd [#allocation3], %s75
      %s78 = sshll.u32 [#allocation2], 4
      %s79 = int_to_ptr.vmem [resolvable:$true] %s78
      %81 = dma.vmem_to_hbm [thread:$0]  %s79, 16, %s1, [#allocation3]
    $region9: #{tpu_custom_call.1} parent=1 // pred_fallthru
      _
    // Predicated region
    $region10: #{tpu_custom_call.1} parent=1 // pred_check
      _
    $region11: #{tpu_custom_call.1} parent=1 // pred_check_branch
      %83 = sbr.rel (0) target = $region13
    $region12: #{tpu_custom_call.1} parent=1 // pred_region
      %84 = dma.done [#allocation3], 16
    $region13: #{tpu_custom_call.1} parent=1 // pred_fallthru
      _
    %85 = vsyncpa [#allocation3], 1

</llo_original>
